<compile_context>
chip_gen: v5e
topology: v5e:2x2
jax: 0.10.0
libtpu: 0.0.40
codegen_flags: <defaults>
</compile_context>

<pallas_src>
import jax
import jax.numpy as jnp
from jax.experimental import pallas as pl
from jax.experimental.pallas import tpu as pltpu


# ---------------------------------------------------------------------------
# Pallas kernel: fused encoder projection + evaluater head
# ---------------------------------------------------------------------------
def _fused_eval_kernel(x_ref, w_enc_ref, b_enc_ref, w_eval_ref, b_eval_ref,
                       o_ref, h_ref):
    # Encoder: h = tanh(x @ W_enc + b_enc); computed once per row tile
    # (inner grid axis j == 0) and reused across all vocab tiles.
    @pl.when(pl.program_id(1) == 0)
    def _():
        h = jnp.tanh(
            jnp.dot(x_ref[...], w_enc_ref[...],
                    preferred_element_type=jnp.float32)
            + b_enc_ref[...]
        )
        h_ref[...] = h.astype(h_ref.dtype)

    # Evaluater: logits_tile = h @ W_eval[:, tile] + b_eval[tile]  (f32 acc).
    acc = jnp.dot(h_ref[...], w_eval_ref[...],
                  preferred_element_type=jnp.float32)
    o_ref[...] = (acc + b_eval_ref[...]).astype(o_ref.dtype)


def _round_up(x, m):
    return (x + m - 1) // m * m


def _fused_evaluate(x_emb, w_enc, b_enc, w_eval, b_eval, *,
                    tm=512, tn=512, out_dtype=jnp.bfloat16):
    """[M, H] embeddings -> [M, V] logits = tanh(x@W_enc+b_enc) @ W_eval + b_eval."""
    M, H = x_emb.shape
    H2, V = w_eval.shape
    assert H2 == H and w_enc.shape == (H, H)
    assert b_enc.shape == (H,) and b_eval.shape == (V,)

    out_bytes = jnp.dtype(out_dtype).itemsize

    # Tile sizes: honour the (8, 128) sublane/lane rule, clamp to padded extents.
    tm = min(tm, _round_up(M, 8))
    tn = min(tn, _round_up(V, 128))

    # Double-buffered pipeline footprint (inputs + output) + encoder scratch.
    def _footprint(tm_, tn_):
        return (2 * 2 * (tm_ * H + H * tn_)      # bf16 x tile + W_eval tile
                + 2 * 2 * H * H                  # bf16 W_enc (resident, 2 bufs)
                + 2 * 4 * (H + tn_)              # f32 bias rows, 2 bufs
                + 2 * out_bytes * tm_ * tn_      # output tiles, 2 bufs
                + 2 * tm_ * H)                   # bf16 h scratch

    vmem_limit = 32 * 1024 * 1024  # scoped budget safe on v5e / v6e / v7x
    budget = (vmem_limit * 3) // 4
    # Shrink vocab tile first (keeps lane-dense multiple of 128), then rows.
    while _footprint(tm, tn) > budget and tn > 128:
        tn //= 2
    while _footprint(tm, tn) > budget and tm > 8:
        tm = _round_up(tm // 2, 8)

    Mp = _round_up(M, tm)
    Vp = _round_up(V, tn)

    # Pad rows / vocab up to tile multiples (padded rows/cols are sliced off).
    x_p = x_emb if Mp == M else jnp.pad(x_emb, ((0, Mp - M), (0, 0)))
    w_eval_p = w_eval if Vp == V else jnp.pad(w_eval, ((0, 0), (0, Vp - V)))
    b_eval_p = b_eval if Vp == V else jnp.pad(b_eval, (0, Vp - V))

    # bf16 operands for the MXU (no-op if already bf16); biases stay f32 and
    # are added to the f32 accumulator.
    x_b = x_p.astype(jnp.bfloat16)
    w_enc_b = w_enc.astype(jnp.bfloat16)
    w_eval_b = w_eval_p.astype(jnp.bfloat16)
    b_enc_f = b_enc.reshape(1, H).astype(jnp.float32)
    b_eval_f = b_eval_p.reshape(1, Vp).astype(jnp.float32)

    grid = (Mp // tm, Vp // tn)
    cost = pl.CostEstimate(
        flops=2 * M * H * H + 2 * M * H * V,
        transcendentals=M * H,
        bytes_accessed=(2 * (M * H + H * H + H * V) + 4 * (H + V)
                        + out_bytes * M * V),
    )

    out = pl.pallas_call(
        _fused_eval_kernel,
        out_shape=jax.ShapeDtypeStruct((Mp, Vp), out_dtype),
        grid_spec=pltpu.PrefetchScalarGridSpec(
            num_scalar_prefetch=0,
            grid=grid,
            in_specs=[
                pl.BlockSpec((tm, H), lambda i, j: (i, 0)),   # embedded row tile
                pl.BlockSpec((H, H), lambda i, j: (0, 0)),    # W_enc (resident)
                pl.BlockSpec((1, H), lambda i, j: (0, 0)),    # b_enc
                pl.BlockSpec((H, tn), lambda i, j: (0, j)),   # W_eval column tile
                pl.BlockSpec((1, tn), lambda i, j: (0, j)),   # b_eval tile
            ],
            out_specs=pl.BlockSpec((tm, tn), lambda i, j: (i, j)),
            scratch_shapes=[pltpu.VMEM((tm, H), jnp.bfloat16)],  # encoder h
        ),
        compiler_params=pltpu.CompilerParams(
            # Row axis parallel (megacore sharding). The vocab axis must stay
            # "arbitrary": the h scratch is carried across the inner j loop.
            dimension_semantics=("parallel", "arbitrary"),
            vmem_limit_bytes=vmem_limit,
        ),
        cost_estimate=cost,
    )(x_b, w_enc_b, b_enc_f, w_eval_b, b_eval_f)

    return out[:M, :V]


# ---------------------------------------------------------------------------
# Evaluate4rec forward
# ---------------------------------------------------------------------------
def evaluate4rec_forward(item_ids, params, *, out_dtype=jnp.bfloat16):
    """item_ids: [B, S] int32 -> logits [B, S, vocab] (bf16)."""
    B, S = item_ids.shape
    H = params["emb"].shape[1]
    V = params["w_eval"].shape[1]

    # base_model front-end: embedding gather (glue; tiny vs the vocab matmul).
    x = jnp.take(params["emb"], item_ids, axis=0).reshape(B * S, H)

    # Fused encoder projection + evaluater head (single Pallas kernel).
    logits = _fused_evaluate(x, params["w_enc"], params["b_enc"],
                             params["w_eval"], params["b_eval"],
                             out_dtype=out_dtype)
    return logits.reshape(B, S, V)


def init_params(key, vocab_size, hidden_size):
    k1, k2, k3, k4, k5 = jax.random.split(key, 5)
    scale_h = 1.0 / jnp.sqrt(hidden_size)
    return {
        # base_model params (synthetic encoder). Weights pre-cast to bf16 once
        # so the kernel call does not pay a per-call f32->bf16 conversion pass.
        "emb": jax.random.normal(k1, (vocab_size, hidden_size), jnp.float32) * 0.02,
        "w_enc": jax.random.uniform(k2, (hidden_size, hidden_size), jnp.float32,
                                    -scale_h, scale_h).astype(jnp.bfloat16),
        "b_enc": jax.random.uniform(k3, (hidden_size,), jnp.float32,
                                    -scale_h, scale_h),
        # evaluater = nn.Linear(hidden_size, vocab_size); stored as [H, V] (== W^T)
        "w_eval": jax.random.uniform(k4, (hidden_size, vocab_size), jnp.float32,
                                     -scale_h, scale_h).astype(jnp.bfloat16),
        "b_eval": jax.random.uniform(k5, (vocab_size,), jnp.float32,
                                     -scale_h, scale_h),
    }


if __name__ == "__main__":
    B, S = 2, 8            # batch, sequence length
    HIDDEN = 32            # base_model.args.hidden_size
    VOCAB = 256            # base_model.vocab_size

    key = jax.random.PRNGKey(0)
    kp, kx = jax.random.split(key)
    params = init_params(kp, VOCAB, HIDDEN)
    item_ids = jax.random.randint(kx, (B, S), 0, VOCAB, dtype=jnp.int32)

    logits = evaluate4rec_forward(item_ids, params)
    jax.block_until_ready(logits)

    # Pure-JAX reference mirroring the kernel's bf16-operand / f32-accumulate math.
    xb = jnp.take(params["emb"], item_ids, axis=0).reshape(B * S, HIDDEN)
    xb = xb.astype(jnp.bfloat16)
    h_ref = jnp.tanh(
        jnp.dot(xb, params["w_enc"].astype(jnp.bfloat16),
                preferred_element_type=jnp.float32) + params["b_enc"]
    ).astype(jnp.bfloat16)
    ref = (jnp.dot(h_ref, params["w_eval"].astype(jnp.bfloat16),
                   preferred_element_type=jnp.float32)
           + params["b_eval"]).reshape(B, S, VOCAB)

    assert logits.shape == (B, S, VOCAB)
    assert logits.dtype == jnp.bfloat16
    assert jnp.allclose(logits.astype(jnp.float32), ref, atol=2e-2, rtol=2e-2)

    print("KERNEL_OK")
</pallas_src>

<mosaic_0001>
module attributes {stable_mosaic.version = 11 : i64} {
  func.func @_fused_eval_kernel(%arg0: i32, %arg1: i32, %arg2: memref<16x32xbf16, #tpu.memory_space<vmem>>, %arg3: memref<32x32xbf16, #tpu.memory_space<vmem>>, %arg4: memref<1x32xf32, #tpu.memory_space<vmem>>, %arg5: memref<32x256xbf16, #tpu.memory_space<vmem>>, %arg6: memref<1x256xf32, #tpu.memory_space<vmem>>, %arg7: memref<16x256xbf16, #tpu.memory_space<vmem>>, %arg8: memref<16x32xbf16, #tpu.memory_space<vmem>>) attributes {dimension_semantics = [#tpu.dimension_semantics<parallel>, #tpu.dimension_semantics<arbitrary>], iteration_bounds = array<i64: 1, 1>, scalar_prefetch = 0 : i64, scratch_operands = 1 : i64, tpu.core_type = #tpu.core_type<tc>, window_params = [{transform_indices = @transform_0, window_bounds = array<i64: 16, 32>}, {pipeline_mode = #tpu.pipeline_mode<synchronous>, transform_indices = @transform_1, window_bounds = array<i64: 32, 32>}, {pipeline_mode = #tpu.pipeline_mode<synchronous>, transform_indices = @transform_2, window_bounds = array<i64: 1, 32>}, {transform_indices = @transform_3, window_bounds = array<i64: 32, 256>}, {transform_indices = @transform_4, window_bounds = array<i64: 1, 256>}, {transform_indices = @transform_5, window_bounds = array<i64: 16, 256>}]} {
    %c0_i32 = arith.constant 0 : i32
    %0 = arith.cmpi eq, %arg1, %c0_i32 : i32
    %1 = arith.extui %0 : i1 to i32
    %c0_i32_0 = arith.constant 0 : i32
    %2 = arith.cmpi ne, %1, %c0_i32_0 : i32
    scf.if %2 {
      %c0_8 = arith.constant 0 : index
      %c0_9 = arith.constant 0 : index
      %11 = vector.load %arg2[%c0_8, %c0_9] : memref<16x32xbf16, #tpu.memory_space<vmem>>, vector<16x32xbf16>
      %c0_10 = arith.constant 0 : index
      %c0_11 = arith.constant 0 : index
      %12 = vector.load %arg3[%c0_10, %c0_11] : memref<32x32xbf16, #tpu.memory_space<vmem>>, vector<32x32xbf16>
      %cst_12 = arith.constant dense<0.000000e+00> : vector<16x32xf32>
      %13 = tpu.matmul %11, %12, %cst_12 {dimension_numbers = #tpu.dot_dimension_numbers<[1], [0], [0], [1], [0, 0, 1, 1], [], []>} : vector<16x32xbf16>, vector<32x32xbf16>, vector<16x32xf32> -> vector<16x32xf32>
      %c0_13 = arith.constant 0 : index
      %c0_14 = arith.constant 0 : index
      %14 = vector.load %arg4[%c0_13, %c0_14] : memref<1x32xf32, #tpu.memory_space<vmem>>, vector<1x32xf32>
      %15 = vector.broadcast %14 : vector<1x32xf32> to vector<16x32xf32>
      %16 = arith.addf %13, %15 : vector<16x32xf32>
      %17 = math.tanh %16 : vector<16x32xf32>
      %18 = arith.truncf %17 : vector<16x32xf32> to vector<16x32xbf16>
      %c0_15 = arith.constant 0 : index
      %c0_16 = arith.constant 0 : index
      %19 = vector.load %arg8[%c0_15, %c0_16] : memref<16x32xbf16, #tpu.memory_space<vmem>>, vector<16x32xbf16>
      tpu.vector_store %arg8[%c0_15, %c0_16], %18 {strides = array<i32>} : memref<16x32xbf16, #tpu.memory_space<vmem>>, vector<16x32xbf16>,
    } else {
    }
    %c0 = arith.constant 0 : index
    %c0_1 = arith.constant 0 : index
    %3 = vector.load %arg8[%c0, %c0_1] : memref<16x32xbf16, #tpu.memory_space<vmem>>, vector<16x32xbf16>
    %c0_2 = arith.constant 0 : index
    %c0_3 = arith.constant 0 : index
    %4 = vector.load %arg5[%c0_2, %c0_3] : memref<32x256xbf16, #tpu.memory_space<vmem>>, vector<32x256xbf16>
    %cst = arith.constant dense<0.000000e+00> : vector<16x256xf32>
    %5 = tpu.matmul %3, %4, %cst {dimension_numbers = #tpu.dot_dimension_numbers<[1], [0], [0], [1], [0, 0, 1, 1], [], []>} : vector<16x32xbf16>, vector<32x256xbf16>, vector<16x256xf32> -> vector<16x256xf32>
    %c0_4 = arith.constant 0 : index
    %c0_5 = arith.constant 0 : index
    %6 = vector.load %arg6[%c0_4, %c0_5] : memref<1x256xf32, #tpu.memory_space<vmem>>, vector<1x256xf32>
    %7 = vector.broadcast %6 : vector<1x256xf32> to vector<16x256xf32>
    %8 = arith.addf %5, %7 : vector<16x256xf32>
    %9 = arith.truncf %8 : vector<16x256xf32> to vector<16x256xbf16>
    %c0_6 = arith.constant 0 : index
    %c0_7 = arith.constant 0 : index
    %10 = vector.load %arg7[%c0_6, %c0_7] : memref<16x256xbf16, #tpu.memory_space<vmem>>, vector<16x256xbf16>
    tpu.vector_store %arg7[%c0_6, %c0_7], %9 {strides = array<i32>} : memref<16x256xbf16, #tpu.memory_space<vmem>>, vector<16x256xbf16>,
    return
  }
  func.func @transform_0(%arg0: i32, %arg1: i32) -> (i32, i32) {
    %c0_i32 = arith.constant 0 : i32
    %c0_i32_0 = arith.constant 0 : i32
    return %arg0, %c0_i32 : i32, i32
  }
  func.func @transform_1(%arg0: i32, %arg1: i32) -> (i32, i32) {
    %c0_i32 = arith.constant 0 : i32
    %c0_i32_0 = arith.constant 0 : i32
    %c0_i32_1 = arith.constant 0 : i32
    return %c0_i32, %c0_i32_0 : i32, i32
  }
  func.func @transform_2(%arg0: i32, %arg1: i32) -> (i32, i32) {
    %c0_i32 = arith.constant 0 : i32
    %c0_i32_0 = arith.constant 0 : i32
    %c0_i32_1 = arith.constant 0 : i32
    return %c0_i32, %c0_i32_0 : i32, i32
  }
  func.func @transform_3(%arg0: i32, %arg1: i32) -> (i32, i32) {
    %c0_i32 = arith.constant 0 : i32
    %c0_i32_0 = arith.constant 0 : i32
    return %c0_i32, %arg1 : i32, i32
  }
  func.func @transform_4(%arg0: i32, %arg1: i32) -> (i32, i32) {
    %c0_i32 = arith.constant 0 : i32
    %c0_i32_0 = arith.constant 0 : i32
    return %c0_i32, %arg1 : i32, i32
  }
  func.func @transform_5(%arg0: i32, %arg1: i32) -> (i32, i32) {
    %c0_i32 = arith.constant 0 : i32
    return %arg0, %arg1 : i32, i32
  }
}

</mosaic_0001>

<llo_original>
// kernel: tpu_custom_call.1
$region0: #{tpu_custom_call.1}
  #allocation0 [shape = 'u32[]', space=smem, size = 0x4, offset = 0x4, fixed_abs, tag = 'smem constant byte address 0x4 - core index']
  #allocation1 [shape = 'u32[72,128]{1,0:T(1,128)}', space=vmem, size = 0x9000, scoped, tag = 'internal scratch']
  #allocation2 [shape = 'bf16[16,32]{1,0:T(8,128)(2,1)}', space=vmem, size = 0x1000, scoped, tag = 'scratch operand']
  %s0 = inlined_call_operand.hbm [shape: bf16[16,32], index: 0, kind: input, shape index: {}]
  %s1 = inlined_call_operand.hbm [shape: bf16[32,32], index: 1, kind: input, shape index: {}]
  %s2 = inlined_call_operand.vmem [shape: f32[1,32], index: 2, kind: input, shape index: {}]
  %s3 = inlined_call_operand.hbm [shape: bf16[32,256], index: 3, kind: input, shape index: {}]
  %s4 = inlined_call_operand.vmem [shape: f32[1,256], index: 4, kind: input, shape index: {}]
  %s5 = inlined_call_operand.hbm [shape: bf16[16,256], index: 5, kind: output, shape index: {}]
  %s6 = sld [smem:[#allocation0]]
  $region46: #{tpu_custom_call.1} parent=0
    _
  %s8 = ssub.s32 1, %s6
  %s9 = scalar_select 0, %s8, %s6
  $region1: #{tpu_custom_call.1} parent=0
    #allocation3 [shape = 'u8[4096]{0}', space=vmem, size = 0x1000, scoped, tag = 'input window, operand 0, single buffered']
    #allocation4 [shape = 's32[1]{0}', space=sflag, size = 0x4, scoped, tag = 'scoped memory for tpu_custom_call.1']
    #allocation5 [shape = 's32[1]{0}', space=sflag, size = 0x4, scoped, tag = 'scoped memory for tpu_custom_call.1']
    #allocation6 [shape = 'u8[8192]{0}', space=vmem, size = 0x2000, scoped, tag = 'input window, operand 1, single buffered']
    #allocation7 [shape = 's32[1]{0}', space=sflag, size = 0x4, scoped, tag = 'scoped memory for tpu_custom_call.1']
    #allocation8 [shape = 'u8[16384]{0}', space=vmem, size = 0x4000, scoped, tag = 'input window, operand 3, single buffered']
    #allocation9 [shape = 'u8[8192]{0}', space=vmem, size = 0x2000, scoped, tag = 'output window, operand 0, single buffered']
    %10 = vsyncpa [#allocation4], 0
    %11 = vsyncpa [#allocation7], 0
    %12 = vsyncpa [#allocation5], 0
    // Predicated region
    $region2: #{tpu_custom_call.1} parent=1 // pred_check
      _
    $region3: #{tpu_custom_call.1} parent=1 // pred_check_branch
      %14 = sbr.rel (0) target = $region5
    $region4: #{tpu_custom_call.1} parent=1 // pred_region
      %16 = vsyncadd [#allocation4], 0
      %s17 = sshll.u32 %s0, 4
      %s18 = int_to_ptr.hbm [resolvable:$true] %s17
      %s19 = sshll.u32 [#allocation3], 4
      %s20 = int_to_ptr.vmem [resolvable:$true] %s19
      %25 = dma.hbm_to_vmem [thread:$0]  %s18, 128, %s20, [#allocation4], 64, 64, 4
    $region5: #{tpu_custom_call.1} parent=1 // pred_fallthru
      _
    // Predicated region
    $region6: #{tpu_custom_call.1} parent=1 // pred_check
      _
    $region7: #{tpu_custom_call.1} parent=1 // pred_check_branch
      %27 = sbr.rel (0) target = $region9
    $region8: #{tpu_custom_call.1} parent=1 // pred_region
      %29 = vsyncadd [#allocation7], 0
      %s30 = sshll.u32 %s1, 4
      %s31 = int_to_ptr.hbm [resolvable:$true] %s30
      %s32 = sshll.u32 [#allocation6], 4
      %s33 = int_to_ptr.vmem [resolvable:$true] %s32
      %38 = dma.hbm_to_vmem [thread:$0]  %s31, 256, %s33, [#allocation7], 64, 64, 4
    $region9: #{tpu_custom_call.1} parent=1 // pred_fallthru
      _
    // Predicated region
    $region10: #{tpu_custom_call.1} parent=1 // pred_check
      _
    $region11: #{tpu_custom_call.1} parent=1 // pred_check_branch
      %40 = sbr.rel (0) target = $region13
    $region12: #{tpu_custom_call.1} parent=1 // pred_region
      _
    $region13: #{tpu_custom_call.1} parent=1 // pred_fallthru
      _
    // Predicated region
    $region14: #{tpu_custom_call.1} parent=1 // pred_check
      _
    $region15: #{tpu_custom_call.1} parent=1 // pred_check_branch
      %42 = sbr.rel (0) target = $region17
    $region16: #{tpu_custom_call.1} parent=1 // pred_region
      %44 = vsyncadd [#allocation7], 0
      %s45 = sshll.u32 %s3, 4
      %s46 = int_to_ptr.hbm [resolvable:$true] %s45
      %s47 = sshll.u32 [#allocation8], 4
      %s48 = int_to_ptr.vmem [resolvable:$true] %s47
      %53 = dma.hbm_to_vmem [thread:$0]  %s46, 512, %s48, [#allocation7], 128, 128, 8
    $region17: #{tpu_custom_call.1} parent=1 // pred_fallthru
      _
    // Predicated region
    $region18: #{tpu_custom_call.1} parent=1 // pred_check
      _
    $region19: #{tpu_custom_call.1} parent=1 // pred_check_branch
      %55 = sbr.rel (0) target = $region21
    $region20: #{tpu_custom_call.1} parent=1 // pred_region
      _
    $region21: #{tpu_custom_call.1} parent=1 // pred_fallthru
      _
    // Predicated region
    $region22: #{tpu_custom_call.1} parent=1 // pred_check
      _
    $region23: #{tpu_custom_call.1} parent=1 // pred_check_branch
      %57 = sbr.rel (0) target = $region25
    $region24: #{tpu_custom_call.1} parent=1 // pred_region
      %59 = dma.done [#allocation4], 128
    $region25: #{tpu_custom_call.1} parent=1 // pred_fallthru
      _
    // Predicated region
    $region26: #{tpu_custom_call.1} parent=1 // pred_check
      _
    $region27: #{tpu_custom_call.1} parent=1 // pred_check_branch
      %61 = sbr.rel (0) target = $region29
    $region28: #{tpu_custom_call.1} parent=1 // pred_region
      %63 = dma.done [#allocation7], 256
    $region29: #{tpu_custom_call.1} parent=1 // pred_fallthru
      _
    // Predicated region
    $region30: #{tpu_custom_call.1} parent=1 // pred_check
      _
    $region31: #{tpu_custom_call.1} parent=1 // pred_check_branch
      %65 = sbr.rel (0) target = $region33
    $region32: #{tpu_custom_call.1} parent=1 // pred_region
      %67 = dma.done [#allocation7], 512
    $region33: #{tpu_custom_call.1} parent=1 // pred_fallthru
      _
    %p69 = scmp.eq.s32.totalorder 0, 0
    // Predicated region
    $region34: #{tpu_custom_call.1} parent=1 // pred_check
      %p70 = pneg %p69
    $region35: #{tpu_custom_call.1} parent=1 // pred_check_branch
      %72 = sbr.rel (%p70) target = $region37
    $region36: #{tpu_custom_call.1} parent=1 // pred_region
      %v73 = vld [vmem:[#allocation3] sm:$0xf]
      %v74 = vld [vmem:[#allocation3 + $0x4] sm:$0xf]
      %v75 = vld [vmem:[#allocation6] sm:$0xf]
      %v76 = vld [vmem:[#allocation6 + $0x4] sm:$0xf]
      %v77 = vld [vmem:[#allocation6 + $0x8] sm:$0xf]
      %v78 = vld [vmem:[#allocation6 + $0xc] sm:$0xf]
      %v79 = vld [vmem:[%s2] sm:$0x1]
      %v81 = vperm.slane %v79, 0
      %v85 = vunpack.c.l.b16 %v73
      %v86 = vunpack.c.l.b16 %v74
      %v87 = vpack.c.b16 %v86, %v85
      %v92 = vunpack.c.l.b16 %v75
      %v93 = vunpack.c.l.b16 %v76
      %v94 = vunpack.c.l.b16 %v77
      %v95 = vunpack.c.l.b16 %v78
      %v96 = vpack.c.b16 %v93, %v92
      %v97 = vpack.c.b16 %v95, %v94
      %vm100 = vcmask 261120
      %v102 = vsel %vm100, %v87, 0
      %104 = vmatpush.bf16.msra.mxu0 0
      %105 = vmatpush.bf16.msra.mxu0 0
      %106 = vmatpush.bf16.msra.mxu0 0
      %107 = vmatpush.bf16.msra.mxu0 0
      %108 = vmatpush.bf16.msra.mxu0 0
      %109 = vmatpush.bf16.msra.mxu0 0
      %110 = vmatpush.bf16.msra.mxu0 %v97
      %111 = vmatpush.bf16.msra.mxu0 %v96
      %112 = vmatmul.bf16.gmra.mxu0 %v102
      %v113 = vpop.f32.mrf.mxu0
      %v114 = vadd.f32 %v81, %v113
      %v115 = vpop.f32.mrf.mxu0
      %v116 = vadd.f32 %v81, %v115
      %117 = vdwg.mxu0
      %v118 = vtanh.pop %v114
      %v119 = vtanh.pop %v116
      %v120 = vpack.c.bf16 %v118, %v118
      %v121 = vpack.c.bf16 %v119, %v119
      %vm122 = vcmask 257024
      %123 = vst.msk [vmem:[#allocation2] sm:$0xf] %vm122, %v120
      %124 = vst.msk [vmem:[#allocation2 + $0x4] sm:$0xf] %vm122, %v121
    $region37: #{tpu_custom_call.1} parent=1 // pred_fallthru
      _
    %v125 = vld [vmem:[#allocation2] sm:$0xf]
    %v126 = vld [vmem:[#allocation2 + $0x4] sm:$0xf]
    %v127 = vld [vmem:[#allocation8] sm:$0xff]
    %v128 = vld [vmem:[#allocation8 + $0x8] sm:$0xff]
    %v129 = vld [vmem:[#allocation8 + $0x10] sm:$0xff]
    %v130 = vld [vmem:[#allocation8 + $0x18] sm:$0xff]
    %v131 = vld [vmem:[%s4] sm:$0x3]
    %v133 = vperm.slane %v131, 0
    %v134 = vperm.slane %v131, 1
    %v139 = vunpack.c.l.b16 %v125
    %v140 = vunpack.c.l.b16 %v126
    %v141 = vpack.c.b16 %v140, %v139
    %v146 = vunpack.c.l.b16 %v127
    %v147 = vunpack.c.h.b16 %v127
    %v148 = vunpack.c.l.b16 %v128
    %v149 = vunpack.c.h.b16 %v128
    %v150 = vunpack.c.l.b16 %v129
    %v151 = vunpack.c.h.b16 %v129
    %v152 = vunpack.c.l.b16 %v130
    %v153 = vunpack.c.h.b16 %v130
    %v154 = vpack.c.b16 %v148, %v146
    %v155 = vpack.c.b16 %v149, %v147
    %v156 = vpack.c.b16 %v152, %v150
    %v157 = vpack.c.b16 %v153, %v151
    %vm162 = vcmask 261120
    %v164 = vsel %vm162, %v141, 0
    %166 = vmatpush.bf16.msra.mxu0 0
    %167 = vmatpush.bf16.msra.mxu0 0
    %168 = vmatpush.bf16.msra.mxu0 0
    %169 = vmatpush.bf16.msra.mxu0 0
    %170 = vmatpush.bf16.msra.mxu0 0
    %171 = vmatpush.bf16.msra.mxu0 0
    %172 = vmatpush.bf16.msra.mxu0 %v156
    %173 = vmatpush.bf16.msra.mxu0 %v154
    %174 = vmatmul.bf16.gmra.mxu0 %v164
    %v175 = vpop.f32.mrf.mxu0
    %v176 = vadd.f32 %v133, %v175
    %v177 = vpop.f32.mrf.mxu0
    %v178 = vadd.f32 %v133, %v177
    %179 = vdwg.mxu0
    %180 = vmatpush.bf16.msra.mxu0 0
    %181 = vmatpush.bf16.msra.mxu0 0
    %182 = vmatpush.bf16.msra.mxu0 0
    %183 = vmatpush.bf16.msra.mxu0 0
    %184 = vmatpush.bf16.msra.mxu0 0
    %185 = vmatpush.bf16.msra.mxu0 0
    %186 = vmatpush.bf16.msra.mxu0 %v157
    %187 = vmatpush.bf16.msra.mxu0 %v155
    %188 = vmatmul.bf16.gmra.mxu0 %v164
    %v189 = vpop.f32.mrf.mxu0
    %v190 = vadd.f32 %v134, %v189
    %v191 = vpop.f32.mrf.mxu0
    %v192 = vadd.f32 %v134, %v191
    %193 = vdwg.mxu0
    %v194 = vpack.c.bf16 %v190, %v176
    %v195 = vpack.c.bf16 %v192, %v178
    %196 = vst [vmem:[#allocation9] sm:$0xff] %v194
    %197 = vst [vmem:[#allocation9 + $0x8] sm:$0xff] %v195
    // Predicated region
    $region38: #{tpu_custom_call.1} parent=1 // pred_check
      _
    $region39: #{tpu_custom_call.1} parent=1 // pred_check_branch
      %199 = sbr.rel (0) target = $region41
    $region40: #{tpu_custom_call.1} parent=1 // pred_region
      %201 = vsyncadd [#allocation5], 0
      %s202 = sshll.u32 [#allocation9], 4
      %s203 = int_to_ptr.vmem [resolvable:$true] %s202
      %s204 = sshll.u32 %s5, 4
      %s205 = int_to_ptr.hbm [resolvable:$true] %s204
      %210 = dma.vmem_to_hbm [thread:$0]  %s203, 256, %s205, [#allocation5], 128, 128, 8
    $region41: #{tpu_custom_call.1} parent=1 // pred_fallthru
      _
    // Predicated region
    $region42: #{tpu_custom_call.1} parent=1 // pred_check
      _
    $region43: #{tpu_custom_call.1} parent=1 // pred_check_branch
      %212 = sbr.rel (0) target = $region45
    $region44: #{tpu_custom_call.1} parent=1 // pred_region
      %214 = dma.done [#allocation5], 256
    $region45: #{tpu_custom_call.1} parent=1 // pred_fallthru
      _
    %215 = vsyncpa [#allocation4], 1
    %216 = vsyncpa [#allocation7], 1
    %217 = vsyncpa [#allocation5], 1

</llo_original>
